<compile_context>
chip_gen: v6e
topology: v6e:2x2x1
jax: 0.10.0
libtpu: 0.0.40
codegen_flags: <defaults>
</compile_context>

<pallas_src>
import functools

import jax
import jax.numpy as jnp
import numpy as np
from jax.experimental import pallas as pl
from jax.experimental.pallas import tpu as pltpu


def _round_up(x, m):
    return ((x + m - 1) // m) * m


def _supcon_kernel(q_row_ref, keys_ref, t_col_ref, t_row_ref, out_ref, *,
                   inv_temperature, block_rows):
    n = keys_ref.shape[0]

    # bf16 row tile straight from HBM; fold 1/T here (cheap, O(TM*D)).
    q_rows = q_row_ref[...]                                        # (TM, D) bf16
    q_scaled = (q_rows * inv_temperature).astype(jnp.bfloat16)     # (TM, D) bf16

    # (TM, N) logits on the MXU: contract the lane (feature) dim of both
    # operands directly (A @ B^T without materialising a transpose), f32 acc.
    logits = jax.lax.dot_general(
        q_scaled, keys_ref[...],
        dimension_numbers=(((1,), (1,)), ((), ())),
        preferred_element_type=jnp.float32)                        # (TM, N) f32

    # Row max over ALL columns (diagonal included) -- exactly the reference.
    row_max = jnp.max(logits, axis=1, keepdims=True)               # (TM, 1)

    # Single (TM, N) diagonal mask, used to extract the *exact* MXU diagonal.
    row_ids = (pl.program_id(0) * block_rows
               + jax.lax.broadcasted_iota(jnp.int32, (block_rows, 1), 0))
    col_ids = jax.lax.broadcasted_iota(jnp.int32, (block_rows, n), 1)
    is_diag = col_ids == row_ids                                   # (TM, N) bool
    diag = jnp.sum(jnp.where(is_diag, logits, 0.0),
                   axis=1, keepdims=True)                          # (TM, 1)

    # exp-sum over the off-diagonal columns: sum everything, subtract the
    # identical diagonal term (never negative: it is a term of the sum itself).
    exp_sum = (jnp.sum(jnp.exp(logits - row_max), axis=1, keepdims=True)
               - jnp.exp(diag - row_max))                          # (TM, 1)
    log_z = jnp.log(exp_sum + 1e-12)                               # (TM, 1)

    # Positives INCLUDING the diagonal (no off-diagonal mask plane); corrected
    # with the diagonal logit / the self count below.
    pos_incl = t_col_ref[...] == t_row_ref[...]                    # (TM, N) bool
    sum_pos = jnp.sum(jnp.where(pos_incl, logits, 0.0),
                      axis=1, keepdims=True)                       # (TM, 1)
    cnt = jnp.sum(jnp.where(pos_incl, 1.0, 0.0),
                  axis=1, keepdims=True) - 1.0                     # (TM, 1)

    #   sum_{j in pos, j != i} (logits_ij - row_max_i - log_z_i)
    # = (sum_pos - diag) - cnt * (row_max + log_z)
    num = sum_pos - diag - cnt * (row_max + log_z)

    # Rows whose label occurs only once: force exact 0/0 -> NaN like PyTorch.
    num = jnp.where(cnt == 0.0, 0.0, num)
    out_ref[...] = num / cnt                                       # (TM, 1)


def _vmem_limit_bytes(footprint_bytes):
    cap = 48 * 1024 * 1024                 # conservative: safe on v7x (64 MiB/TC)
    try:
        cap = int(0.8 * pltpu.get_tpu_info().vmem_capacity_bytes)
    except Exception:
        pass
    want = max(32 * 1024 * 1024, int(footprint_bytes) + 4 * 1024 * 1024)
    return int(min(cap, want))


def _build_supcon_call(*, n, n_pad, d_pad, tm, inv_temperature, resident_mode):
    """resident_mode: a pl.Buffered(...) pipeline mode for the resident
    (constant index_map) operands, or None for the default double-buffering."""
    resident_kw = {} if resident_mode is None else {"pipeline_mode": resident_mode}
    resident_bufs = 2 if resident_mode is None else 1

    # Footprint: resident bf16 keys, double-buffered bf16 row tile, padded
    # label / output buffers, ~6 live (TM, N) f32 temporaries.
    n_lane = _round_up(n, 128)
    footprint = (resident_bufs * n * d_pad * 2
                 + 2 * tm * d_pad * 2
                 + resident_bufs * 8 * n_lane * 4
                 + 4 * tm * 128 * 4
                 + 6 * tm * n_lane * 4)

    kernel = functools.partial(_supcon_kernel,
                               inv_temperature=inv_temperature,
                               block_rows=tm)

    return pl.pallas_call(
        kernel,
        out_shape=jax.ShapeDtypeStruct((n_pad, 1), jnp.float32),
        grid=(n_pad // tm,),
        in_specs=[
            pl.BlockSpec((tm, d_pad), lambda i: (i, 0)),                 # streamed rows
            pl.BlockSpec((n, d_pad), lambda i: (0, 0), **resident_kw),   # resident keys
            pl.BlockSpec((tm, 1), lambda i: (i, 0)),                     # label column
            pl.BlockSpec((1, n), lambda i: (0, 0), **resident_kw),       # label row
        ],
        out_specs=pl.BlockSpec((tm, 1), lambda i: (i, 0)),
        compiler_params=pltpu.CompilerParams(
            dimension_semantics=("parallel",),
            vmem_limit_bytes=_vmem_limit_bytes(footprint)),
        cost_estimate=pl.CostEstimate(
            flops=2 * n_pad * n * d_pad,
            transcendentals=n_pad * n + 2 * n_pad,
            bytes_accessed=n * d_pad * 2 + n_pad * d_pad * 2 + 4 * n + 8 * n_pad),
    )


def supcon_loss(q, labels, temperature=0.07, num_classes=5, block_rows=128):
    """Pallas implementation of SupConLoss.forward(q, labels)."""
    del num_classes  # not used in the forward math (kept for API parity)
    n, d = q.shape
    assert labels.shape[0] == n, "labels must have length q.shape[0]"

    # TM rows per grid step (multiple of 8).  Pad N up to a multiple of TM with
    # zero feature rows + sentinel labels (dropped before the mean); pad the
    # feature dim to a multiple of 128 lanes with zeros (numerically exact).
    tm = max(8, min(_round_up(block_rows, 8), _round_up(n, 8)))
    n_pad = _round_up(n, tm)
    d_pad = _round_up(d, 128)

    q_keys = jnp.pad(q.astype(jnp.float32),
                     ((0, 0), (0, d_pad - d))).astype(jnp.bfloat16)    # (N,  Dp)
    q_rows = jnp.pad(q_keys, ((0, n_pad - n), (0, 0)))                 # (Np, Dp)
    labels = labels.astype(jnp.int32)
    sentinel = jnp.iinfo(jnp.int32).min        # never matches a real column label
    t_col = jnp.pad(labels, (0, n_pad - n),
                    constant_values=sentinel).reshape(n_pad, 1)
    t_row = labels.reshape(1, n)               # unpadded: exp_sum / cnt unchanged

    inv_t = float(1.0 / temperature)
    common = dict(n=n, n_pad=n_pad, d_pad=d_pad, tm=tm, inv_temperature=inv_t)
    args = (q_rows, q_keys, t_col, t_row)
    try:
        # Single-buffer the resident operands (constant index_map needs no
        # double buffer -> halves the dominant VMEM resident).
        out = _build_supcon_call(resident_mode=pl.Buffered(1), **common)(*args)
    except Exception:
        # This jax/Mosaic version rejects Buffered(1): fall back to the default
        # (double-buffered) resident specs -- same semantics, more VMEM.
        out = _build_supcon_call(resident_mode=None, **common)(*args)

    # TODO(synk): for very large N on v7x (64 MiB VMEM/TC), add a column-tiled
    # online-softmax variant instead of keeping the full key matrix resident.
    return -jnp.mean(out[:n, 0])


def _supcon_ref_f32(q, labels, temperature):
    """Exact f32 JAX mirror of the PyTorch reference."""
    n = q.shape[0]
    t = labels.reshape(n, 1)
    mask = (t == t.T).astype(jnp.float32)
    logits_mask = 1.0 - jnp.eye(n, dtype=jnp.float32)
    mask = mask * logits_mask
    logits = (q @ q.T) / temperature
    logits = logits - jnp.max(logits, axis=1, keepdims=True)
    exp_logits = jnp.exp(logits) * logits_mask
    log_prob = logits - jnp.log(jnp.sum(exp_logits, axis=1, keepdims=True) + 1e-12)
    mean_log_prob_pos = jnp.sum(mask * log_prob, axis=1) / jnp.sum(mask, axis=1)
    return jnp.mean(-mean_log_prob_pos)


def _supcon_ref_matched(q, labels, temperature, d_pad):
    """Reference mirroring the kernel's bf16 operands and decomposition."""
    n, d = q.shape
    inv_t = float(1.0 / temperature)
    q_keys = jnp.pad(q.astype(jnp.float32),
                     ((0, 0), (0, d_pad - d))).astype(jnp.bfloat16)
    q_scaled = (q_keys * inv_t).astype(jnp.bfloat16)
    logits = jax.lax.dot_general(
        q_scaled, q_keys,
        dimension_numbers=(((1,), (1,)), ((), ())),
        preferred_element_type=jnp.float32)
    row_max = jnp.max(logits, axis=1, keepdims=True)
    diag = jnp.diagonal(logits).reshape(n, 1)
    exp_sum = (jnp.sum(jnp.exp(logits - row_max), axis=1, keepdims=True)
               - jnp.exp(diag - row_max))
    log_z = jnp.log(exp_sum + 1e-12)
    t = labels.astype(jnp.int32).reshape(n, 1)
    pos_incl = t == t.T
    sum_pos = jnp.sum(jnp.where(pos_incl, logits, 0.0), axis=1, keepdims=True)
    cnt = jnp.sum(jnp.where(pos_incl, 1.0, 0.0), axis=1, keepdims=True) - 1.0
    num = sum_pos - diag - cnt * (row_max + log_z)
    return -jnp.mean(num / cnt)


if __name__ == "__main__":
    batch_size = 16          # N = q.shape[0]; labels also have length N
    feat_dim = 32            # zero-padded to 128 lanes inside the wrapper
    num_classes = 5
    temperature = 0.07

    key = jax.random.PRNGKey(0)
    kq, kl = jax.random.split(key)

    q = jax.random.normal(kq, (batch_size, feat_dim), dtype=jnp.float32)
    q = q / jnp.linalg.norm(q, axis=1, keepdims=True)
    # Every label appears at least twice (standard SupCon batches); otherwise
    # mask.sum() == 0 rows make the reference itself NaN.
    half = jax.random.randint(kl, (batch_size // 2,), 0, num_classes, dtype=jnp.int32)
    labels = jnp.concatenate([half, half])

    loss = supcon_loss(q, labels, temperature=temperature,
                       num_classes=num_classes, block_rows=8)   # grid=(2,)
    loss = jax.block_until_ready(loss)

    ref_matched = _supcon_ref_matched(q, labels, temperature, d_pad=128)
    ref_exact = _supcon_ref_f32(q, labels, temperature)

    # Tight check vs. a reference with identical bf16 operands and the same
    # diagonal-corrected decomposition (slack only for accumulation order).
    np.testing.assert_allclose(np.asarray(loss), np.asarray(ref_matched),
                               rtol=1e-2, atol=5e-3)
    # Semantic check vs. the exact f32 PyTorch-equivalent reference (slack for
    # the bf16 MXU operands amplified by 1/T).
    np.testing.assert_allclose(np.asarray(loss), np.asarray(ref_exact),
                               rtol=5e-2, atol=5e-2)

    print("KERNEL_OK")
</pallas_src>

<mosaic_0001>
module attributes {stable_mosaic.version = 11 : i64} {
  func.func @_supcon_kernel(%arg0: i32, %arg1: memref<8x128xbf16, #tpu.memory_space<vmem>>, %arg2: memref<16x128xbf16, #tpu.memory_space<vmem>>, %arg3: memref<8x1xi32, #tpu.memory_space<vmem>>, %arg4: memref<1x16xi32, #tpu.memory_space<vmem>>, %arg5: memref<8x1xf32, #tpu.memory_space<vmem>>) attributes {dimension_semantics = [#tpu.dimension_semantics<parallel>], iteration_bounds = array<i64: 2>, scalar_prefetch = 0 : i64, scratch_operands = 0 : i64, tpu.core_type = #tpu.core_type<tc>, window_params = [{transform_indices = @transform_0, window_bounds = array<i64: 8, 128>}, {pipeline_mode = #tpu.pipeline_mode<synchronous>, transform_indices = @transform_1, window_bounds = array<i64: 16, 128>}, {transform_indices = @transform_2, window_bounds = array<i64: 8, 1>}, {pipeline_mode = #tpu.pipeline_mode<synchronous>, transform_indices = @transform_3, window_bounds = array<i64: 1, 16>}, {transform_indices = @transform_4, window_bounds = array<i64: 8, 1>}]} {
    %c0 = arith.constant 0 : index
    %c0_0 = arith.constant 0 : index
    %0 = vector.load %arg1[%c0, %c0_0] : memref<8x128xbf16, #tpu.memory_space<vmem>>, vector<8x128xbf16>
    %cst = arith.constant 1.431250e+01 : bf16
    %1 = vector.broadcast %cst : bf16 to vector<8x128xbf16>
    %2 = arith.mulf %0, %1 : vector<8x128xbf16>
    %c0_1 = arith.constant 0 : index
    %c0_2 = arith.constant 0 : index
    %3 = vector.load %arg2[%c0_1, %c0_2] : memref<16x128xbf16, #tpu.memory_space<vmem>>, vector<16x128xbf16>
    %cst_3 = arith.constant dense<0.000000e+00> : vector<8x16xf32>
    %4 = tpu.matmul %2, %3, %cst_3 {dimension_numbers = #tpu.dot_dimension_numbers<[1], [1], [0], [0], [0, 0, 1, 0], [], []>} : vector<8x128xbf16>, vector<16x128xbf16>, vector<8x16xf32> -> vector<8x16xf32>
    %cst_4 = arith.constant dense<0xFF800000> : vector<8xf32>
    %5 = vector.multi_reduction <maximumf>, %4, %cst_4 [1] : vector<8x16xf32> to vector<8xf32>
    %6 = vector.shape_cast %5 : vector<8xf32> to vector<8x1xf32>
    %c8_i32 = arith.constant 8 : i32
    %7 = arith.muli %arg0, %c8_i32 : i32
    %8 = tpu.iota {dimensions = array<i32: 0>} : vector<8x1xi32>
    %9 = vector.broadcast %7 : i32 to vector<8x1xi32>
    %10 = arith.addi %9, %8 : vector<8x1xi32>
    %11 = tpu.iota {dimensions = array<i32: 1>} : vector<8x16xi32>
    %12 = vector.broadcast %10 : vector<8x1xi32> to vector<8x16xi32>
    %13 = arith.cmpi eq, %11, %12 : vector<8x16xi32>
    %cst_5 = arith.constant 0.000000e+00 : f32
    %14 = vector.broadcast %cst_5 : f32 to vector<8x16xf32>
    %15 = arith.select %13, %4, %14 : vector<8x16xi1>, vector<8x16xf32>
    %cst_6 = arith.constant dense<0.000000e+00> : vector<8xf32>
    %16 = vector.multi_reduction <add>, %15, %cst_6 [1] : vector<8x16xf32> to vector<8xf32>
    %17 = vector.shape_cast %16 : vector<8xf32> to vector<8x1xf32>
    %18 = vector.broadcast %6 : vector<8x1xf32> to vector<8x16xf32>
    %19 = arith.subf %4, %18 : vector<8x16xf32>
    %20 = math.exp %19 : vector<8x16xf32>
    %cst_7 = arith.constant dense<0.000000e+00> : vector<8xf32>
    %21 = vector.multi_reduction <add>, %20, %cst_7 [1] : vector<8x16xf32> to vector<8xf32>
    %22 = vector.shape_cast %21 : vector<8xf32> to vector<8x1xf32>
    %23 = arith.subf %17, %6 : vector<8x1xf32>
    %24 = math.exp %23 : vector<8x1xf32>
    %25 = arith.subf %22, %24 : vector<8x1xf32>
    %cst_8 = arith.constant 9.99999996E-13 : f32
    %26 = vector.broadcast %cst_8 : f32 to vector<8x1xf32>
    %27 = arith.addf %25, %26 : vector<8x1xf32>
    %28 = math.log %27 : vector<8x1xf32>
    %c0_9 = arith.constant 0 : index
    %c0_10 = arith.constant 0 : index
    %29 = vector.load %arg3[%c0_9, %c0_10] : memref<8x1xi32, #tpu.memory_space<vmem>>, vector<8x1xi32>
    %c0_11 = arith.constant 0 : index
    %c0_12 = arith.constant 0 : index
    %30 = vector.load %arg4[%c0_11, %c0_12] : memref<1x16xi32, #tpu.memory_space<vmem>>, vector<1x16xi32>
    %31 = vector.broadcast %29 : vector<8x1xi32> to vector<8x16xi32>
    %32 = vector.broadcast %30 : vector<1x16xi32> to vector<8x16xi32>
    %33 = arith.cmpi eq, %31, %32 : vector<8x16xi32>
    %cst_13 = arith.constant 0.000000e+00 : f32
    %34 = vector.broadcast %cst_13 : f32 to vector<8x16xf32>
    %35 = arith.select %33, %4, %34 : vector<8x16xi1>, vector<8x16xf32>
    %cst_14 = arith.constant dense<0.000000e+00> : vector<8xf32>
    %36 = vector.multi_reduction <add>, %35, %cst_14 [1] : vector<8x16xf32> to vector<8xf32>
    %37 = vector.shape_cast %36 : vector<8xf32> to vector<8x1xf32>
    %cst_15 = arith.constant 1.000000e+00 : f32
    %cst_16 = arith.constant 0.000000e+00 : f32
    %38 = vector.broadcast %cst_15 : f32 to vector<8x16xf32>
    %39 = vector.broadcast %cst_16 : f32 to vector<8x16xf32>
    %40 = arith.select %33, %38, %39 : vector<8x16xi1>, vector<8x16xf32>
    %cst_17 = arith.constant dense<0.000000e+00> : vector<8xf32>
    %41 = vector.multi_reduction <add>, %40, %cst_17 [1] : vector<8x16xf32> to vector<8xf32>
    %42 = vector.shape_cast %41 : vector<8xf32> to vector<8x1xf32>
    %cst_18 = arith.constant 1.000000e+00 : f32
    %43 = vector.broadcast %cst_18 : f32 to vector<8x1xf32>
    %44 = arith.subf %42, %43 : vector<8x1xf32>
    %45 = arith.subf %37, %17 : vector<8x1xf32>
    %46 = arith.addf %6, %28 : vector<8x1xf32>
    %47 = arith.mulf %44, %46 : vector<8x1xf32>
    %48 = arith.subf %45, %47 : vector<8x1xf32>
    %cst_19 = arith.constant 0.000000e+00 : f32
    %49 = vector.broadcast %cst_19 : f32 to vector<8x1xf32>
    %50 = arith.cmpf oeq, %44, %49 : vector<8x1xf32>
    %cst_20 = arith.constant 0.000000e+00 : f32
    %51 = vector.broadcast %cst_20 : f32 to vector<8x1xf32>
    %52 = arith.select %50, %51, %48 : vector<8x1xi1>, vector<8x1xf32>
    %53 = arith.divf %52, %44 : vector<8x1xf32>
    %c0_21 = arith.constant 0 : index
    %c0_22 = arith.constant 0 : index
    %54 = vector.load %arg5[%c0_21, %c0_22] : memref<8x1xf32, #tpu.memory_space<vmem>>, vector<8x1xf32>
    tpu.vector_store %arg5[%c0_21, %c0_22], %53 {strides = array<i32>} : memref<8x1xf32, #tpu.memory_space<vmem>>, vector<8x1xf32>,
    return
  }
  func.func @transform_0(%arg0: i32) -> (i32, i32) {
    %c0_i32 = arith.constant 0 : i32
    %c0_i32_0 = arith.constant 0 : i32
    return %arg0, %c0_i32 : i32, i32
  }
  func.func @transform_1(%arg0: i32) -> (i32, i32) {
    %c0_i32 = arith.constant 0 : i32
    %c0_i32_0 = arith.constant 0 : i32
    %c0_i32_1 = arith.constant 0 : i32
    return %c0_i32, %c0_i32_0 : i32, i32
  }
  func.func @transform_2(%arg0: i32) -> (i32, i32) {
    %c0_i32 = arith.constant 0 : i32
    %c0_i32_0 = arith.constant 0 : i32
    return %arg0, %c0_i32 : i32, i32
  }
  func.func @transform_3(%arg0: i32) -> (i32, i32) {
    %c0_i32 = arith.constant 0 : i32
    %c0_i32_0 = arith.constant 0 : i32
    %c0_i32_1 = arith.constant 0 : i32
    return %c0_i32, %c0_i32_0 : i32, i32
  }
  func.func @transform_4(%arg0: i32) -> (i32, i32) {
    %c0_i32 = arith.constant 0 : i32
    %c0_i32_0 = arith.constant 0 : i32
    return %arg0, %c0_i32 : i32, i32
  }
}

module attributes {stable_mosaic.version = 11 : i64} {
  func.func @_supcon_kernel(%arg0: i32, %arg1: memref<8x128xbf16, #tpu.memory_space<vmem>>, %arg2: memref<16x128xbf16, #tpu.memory_space<vmem>>, %arg3: memref<8x1xi32, #tpu.memory_space<vmem>>, %arg4: memref<1x16xi32, #tpu.memory_space<vmem>>, %arg5: memref<8x1xf32, #tpu.memory_space<vmem>>) attributes {dimension_semantics = [#tpu.dimension_semantics<parallel>], iteration_bounds = array<i64: 2>, scalar_prefetch = 0 : i64, scratch_operands = 0 : i64, tpu.core_type = #tpu.core_type<tc>, window_params = [{transform_indices = @transform_0, window_bounds = array<i64: 8, 128>}, {pipeline_mode = #tpu.pipeline_mode<synchronous>, transform_indices = @transform_1, window_bounds = array<i64: 16, 128>}, {transform_indices = @transform_2, window_bounds = array<i64: 8, 1>}, {pipeline_mode = #tpu.pipeline_mode<synchronous>, transform_indices = @transform_3, window_bounds = array<i64: 1, 16>}, {transform_indices = @transform_4, window_bounds = array<i64: 8, 1>}]} {
    %c0 = arith.constant 0 : index
    %c0_0 = arith.constant 0 : index
    %0 = vector.load %arg1[%c0, %c0_0] : memref<8x128xbf16, #tpu.memory_space<vmem>>, vector<8x128xbf16>
    %cst = arith.constant 1.431250e+01 : bf16
    %1 = vector.broadcast %cst : bf16 to vector<8x128xbf16>
    %2 = arith.mulf %0, %1 : vector<8x128xbf16>
    %c0_1 = arith.constant 0 : index
    %c0_2 = arith.constant 0 : index
    %3 = vector.load %arg2[%c0_1, %c0_2] : memref<16x128xbf16, #tpu.memory_space<vmem>>, vector<16x128xbf16>
    %cst_3 = arith.constant dense<0.000000e+00> : vector<8x16xf32>
    %4 = tpu.matmul %2, %3, %cst_3 {dimension_numbers = #tpu.dot_dimension_numbers<[1], [1], [0], [0], [0, 0, 1, 0], [], []>} : vector<8x128xbf16>, vector<16x128xbf16>, vector<8x16xf32> -> vector<8x16xf32>
    %cst_4 = arith.constant dense<0xFF800000> : vector<8xf32>
    %5 = vector.multi_reduction <maximumf>, %4, %cst_4 [1] : vector<8x16xf32> to vector<8xf32>
    %6 = vector.shape_cast %5 : vector<8xf32> to vector<8x1xf32>
    %c8_i32 = arith.constant 8 : i32
    %7 = arith.muli %arg0, %c8_i32 : i32
    %8 = tpu.iota {dimensions = array<i32: 0>} : vector<8x1xi32>
    %9 = vector.broadcast %7 : i32 to vector<8x1xi32>
    %10 = arith.addi %9, %8 : vector<8x1xi32>
    %11 = tpu.iota {dimensions = array<i32: 1>} : vector<8x16xi32>
    %12 = vector.broadcast %10 : vector<8x1xi32> to vector<8x16xi32>
    %13 = arith.cmpi eq, %11, %12 : vector<8x16xi32>
    %cst_5 = arith.constant 0.000000e+00 : f32
    %14 = vector.broadcast %cst_5 : f32 to vector<8x16xf32>
    %15 = arith.select %13, %4, %14 : vector<8x16xi1>, vector<8x16xf32>
    %cst_6 = arith.constant dense<0.000000e+00> : vector<8xf32>
    %16 = vector.multi_reduction <add>, %15, %cst_6 [1] : vector<8x16xf32> to vector<8xf32>
    %17 = vector.shape_cast %16 : vector<8xf32> to vector<8x1xf32>
    %18 = vector.broadcast %6 : vector<8x1xf32> to vector<8x16xf32>
    %19 = arith.subf %4, %18 : vector<8x16xf32>
    %20 = math.exp %19 : vector<8x16xf32>
    %cst_7 = arith.constant dense<0.000000e+00> : vector<8xf32>
    %21 = vector.multi_reduction <add>, %20, %cst_7 [1] : vector<8x16xf32> to vector<8xf32>
    %22 = vector.shape_cast %21 : vector<8xf32> to vector<8x1xf32>
    %23 = arith.subf %17, %6 : vector<8x1xf32>
    %24 = math.exp %23 : vector<8x1xf32>
    %25 = arith.subf %22, %24 : vector<8x1xf32>
    %cst_8 = arith.constant 9.99999996E-13 : f32
    %26 = vector.broadcast %cst_8 : f32 to vector<8x1xf32>
    %27 = arith.addf %25, %26 : vector<8x1xf32>
    %28 = math.log %27 : vector<8x1xf32>
    %c0_9 = arith.constant 0 : index
    %c0_10 = arith.constant 0 : index
    %29 = vector.load %arg3[%c0_9, %c0_10] : memref<8x1xi32, #tpu.memory_space<vmem>>, vector<8x1xi32>
    %c0_11 = arith.constant 0 : index
    %c0_12 = arith.constant 0 : index
    %30 = vector.load %arg4[%c0_11, %c0_12] : memref<1x16xi32, #tpu.memory_space<vmem>>, vector<1x16xi32>
    %31 = vector.broadcast %29 : vector<8x1xi32> to vector<8x16xi32>
    %32 = vector.broadcast %30 : vector<1x16xi32> to vector<8x16xi32>
    %33 = arith.cmpi eq, %31, %32 : vector<8x16xi32>
    %cst_13 = arith.constant 0.000000e+00 : f32
    %34 = vector.broadcast %cst_13 : f32 to vector<8x16xf32>
    %35 = arith.select %33, %4, %34 : vector<8x16xi1>, vector<8x16xf32>
    %cst_14 = arith.constant dense<0.000000e+00> : vector<8xf32>
    %36 = vector.multi_reduction <add>, %35, %cst_14 [1] : vector<8x16xf32> to vector<8xf32>
    %37 = vector.shape_cast %36 : vector<8xf32> to vector<8x1xf32>
    %cst_15 = arith.constant 1.000000e+00 : f32
    %cst_16 = arith.constant 0.000000e+00 : f32
    %38 = vector.broadcast %cst_15 : f32 to vector<8x16xf32>
    %39 = vector.broadcast %cst_16 : f32 to vector<8x16xf32>
    %40 = arith.select %33, %38, %39 : vector<8x16xi1>, vector<8x16xf32>
    %cst_17 = arith.constant dense<0.000000e+00> : vector<8xf32>
    %41 = vector.multi_reduction <add>, %40, %cst_17 [1] : vector<8x16xf32> to vector<8xf32>
    %42 = vector.shape_cast %41 : vector<8xf32> to vector<8x1xf32>
    %cst_18 = arith.constant 1.000000e+00 : f32
    %43 = vector.broadcast %cst_18 : f32 to vector<8x1xf32>
    %44 = arith.subf %42, %43 : vector<8x1xf32>
    %45 = arith.subf %37, %17 : vector<8x1xf32>
    %46 = arith.addf %6, %28 : vector<8x1xf32>
    %47 = arith.mulf %44, %46 : vector<8x1xf32>
    %48 = arith.subf %45, %47 : vector<8x1xf32>
    %cst_19 = arith.constant 0.000000e+00 : f32
    %49 = vector.broadcast %cst_19 : f32 to vector<8x1xf32>
    %50 = arith.cmpf oeq, %44, %49 : vector<8x1xf32>
    %cst_20 = arith.constant 0.000000e+00 : f32
    %51 = vector.broadcast %cst_20 : f32 to vector<8x1xf32>
    %52 = arith.select %50, %51, %48 : vector<8x1xi1>, vector<8x1xf32>
    %53 = arith.divf %52, %44 : vector<8x1xf32>
    %c0_21 = arith.constant 0 : index
    %c0_22 = arith.constant 0 : index
    %54 = vector.load %arg5[%c0_21, %c0_22] : memref<8x1xf32, #tpu.memory_space<vmem>>, vector<8x1xf32>
    tpu.vector_store %arg5[%c0_21, %c0_22], %53 {strides = array<i32>} : memref<8x1xf32, #tpu.memory_space<vmem>>, vector<8x1xf32>,
    return
  }
  func.func @transform_0(%arg0: i32) -> (i32, i32) {
    %c0_i32 = arith.constant 0 : i32
    %c0_i32_0 = arith.constant 0 : i32
    return %arg0, %c0_i32 : i32, i32
  }
  func.func @transform_1(%arg0: i32) -> (i32, i32) {
    %c0_i32 = arith.constant 0 : i32
    %c0_i32_0 = arith.constant 0 : i32
    %c0_i32_1 = arith.constant 0 : i32
    return %c0_i32, %c0_i32_0 : i32, i32
  }
  func.func @transform_2(%arg0: i32) -> (i32, i32) {
    %c0_i32 = arith.constant 0 : i32
    %c0_i32_0 = arith.constant 0 : i32
    return %arg0, %c0_i32 : i32, i32
  }
  func.func @transform_3(%arg0: i32) -> (i32, i32) {
    %c0_i32 = arith.constant 0 : i32
    %c0_i32_0 = arith.constant 0 : i32
    %c0_i32_1 = arith.constant 0 : i32
    return %c0_i32, %c0_i32_0 : i32, i32
  }
  func.func @transform_4(%arg0: i32) -> (i32, i32) {
    %c0_i32 = arith.constant 0 : i32
    %c0_i32_0 = arith.constant 0 : i32
    return %arg0, %c0_i32 : i32, i32
  }
}

</mosaic_0001>

<llo_original>
// kernel: tpu_custom_call.1
$region0: #{tpu_custom_call.1}
  #allocation0 [shape = 'u32[]', space=smem, size = 0x4, offset = 0x4, fixed_abs, tag = 'smem constant byte address 0x4 - core index']
  #allocation1 [shape = 'u32[144,128]{1,0:T(1,128)}', space=vmem, size = 0x12000, scoped, tag = 'internal scratch']
  %s0 = inlined_call_operand.vmem [shape: bf16[16,128], index: 0, kind: input, shape index: {}]
  %s1 = inlined_call_operand.vmem [shape: bf16[16,128], index: 1, kind: input, shape index: {}]
  %s2 = inlined_call_operand.vmem [shape: s32[16,1], index: 2, kind: input, shape index: {}]
  %s3 = inlined_call_operand.vmem [shape: s32[1,16], index: 3, kind: input, shape index: {}]
  %s4 = inlined_call_operand.vmem [shape: f32[16,1], index: 4, kind: output, shape index: {}]
  %s5 = sld [smem:[#allocation0]]
  $region49: #{tpu_custom_call.1} parent=0
    _
  %s7 = ssub.s32 1, %s5
  %s8 = scalar_select 0, %s7, %s5
  loop: start=0, step=1, limit=4
  $region2: #{tpu_custom_call.1} parent=0 // loop_pre_header
    _
  $region3: #{tpu_custom_call.1} parent=0 // loop_header
    %s10 = sphi 0, %s14
    %p11 = scmp.ge.s32.totalorder %s10, 4
    %s20 = sphi 0, %s22
    %s23 = sphi 0, %s20
    %s24 = sphi 0, %s23
    %s40 = sphi 0, %s24
    %s44 = sphi 0, %s44
    %s46 = sphi 0, %s44
    %s47 = sphi 0, %s46
    %s61 = sphi 0, %s47
    %s67 = sphi 0, %s69
    %s70 = sphi 0, %s67
    %s71 = sphi 0, %s70
    %s87 = sphi 0, %s71
    %s91 = sphi 0, %s91
    %s93 = sphi 0, %s91
    %s94 = sphi 0, %s93
    %s108 = sphi 0, %s94
    %s114 = sphi 0, %s116
    %s117 = sphi 0, %s114
    %s118 = sphi 0, %s117
    %s134 = sphi 0, %s118
  $region4: #{tpu_custom_call.1} parent=0 // loop_header_branch
    %13 = sbr.rel (%p11) target = $region8
  $region5: #{tpu_custom_call.1} parent=0 // loop_body
    %s15 = ssub.s32 %s10, 1
    %s16 = ssub.s32 %s10, 2
    %s17 = sadd.s32 %s10, 1
    %s18 = ssub.s32 %s10, %s17
    %p19 = scmp.eq.s32.totalorder %s18, 0
    %s21 = sadd.s32 %s20, 1
    %s22 = scalar_select %p19, %s20, %s21
    %p25 = pneg %p19
    %p26 = scmp.eq.s32.totalorder %s10, 1
    %p27 = por %p25, %p26
    %p28 = scmp.ne.s32.totalorder %s20, %s23
    %p29 = scmp.eq.s32.totalorder %s10, 0
    %p30 = por %p28, %p29
    %p31 = scmp.ne.s32.totalorder %s20, %s23
    %p32 = scmp.eq.s32.totalorder %s15, 1
    %p33 = por %p31, %p32
    %p34 = scmp.ne.s32.totalorder %s23, %s24
    %p35 = scmp.eq.s32.totalorder %s15, 0
    %p36 = por %p34, %p35
    %p37 = scmp.ne.s32.totalorder %s23, %s24
    %p38 = scmp.eq.s32.totalorder %s16, 1
    %p39 = por %p37, %p38
    %p41 = scmp.ne.s32.totalorder %s24, %s40
    %p42 = scmp.eq.s32.totalorder %s16, 0
    %p43 = por %p41, %p42
    %s45 = sadd.s32 %s44, 1
    %p48 = scmp.eq.s32.totalorder %s10, 1
    %p49 = scmp.ne.s32.totalorder %s44, %s46
    %p50 = scmp.eq.s32.totalorder %s10, 0
    %p51 = por %p49, %p50
    %p52 = scmp.ne.s32.totalorder %s44, %s46
    %p53 = scmp.eq.s32.totalorder %s15, 1
    %p54 = por %p52, %p53
    %p55 = scmp.ne.s32.totalorder %s46, %s47
    %p56 = scmp.eq.s32.totalorder %s15, 0
    %p57 = por %p55, %p56
    %p58 = scmp.ne.s32.totalorder %s46, %s47
    %p59 = scmp.eq.s32.totalorder %s16, 1
    %p60 = por %p58, %p59
    %p62 = scmp.ne.s32.totalorder %s47, %s61
    %p63 = scmp.eq.s32.totalorder %s16, 0
    %p64 = por %p62, %p63
    %s65 = ssub.s32 %s10, %s17
    %p66 = scmp.eq.s32.totalorder %s65, 0
    %s68 = sadd.s32 %s67, 1
    %s69 = scalar_select %p66, %s67, %s68
    %p72 = pneg %p66
    %p73 = scmp.eq.s32.totalorder %s10, 1
    %p74 = por %p72, %p73
    %p75 = scmp.ne.s32.totalorder %s67, %s70
    %p76 = scmp.eq.s32.totalorder %s10, 0
    %p77 = por %p75, %p76
    %p78 = scmp.ne.s32.totalorder %s67, %s70
    %p79 = scmp.eq.s32.totalorder %s15, 1
    %p80 = por %p78, %p79
    %p81 = scmp.ne.s32.totalorder %s70, %s71
    %p82 = scmp.eq.s32.totalorder %s15, 0
    %p83 = por %p81, %p82
    %p84 = scmp.ne.s32.totalorder %s70, %s71
    %p85 = scmp.eq.s32.totalorder %s16, 1
    %p86 = por %p84, %p85
    %p88 = scmp.ne.s32.totalorder %s71, %s87
    %p89 = scmp.eq.s32.totalorder %s16, 0
    %p90 = por %p88, %p89
    %s92 = sadd.s32 %s91, 1
    %p95 = scmp.eq.s32.totalorder %s10, 1
    %p96 = scmp.ne.s32.totalorder %s91, %s93
    %p97 = scmp.eq.s32.totalorder %s10, 0
    %p98 = por %p96, %p97
    %p99 = scmp.ne.s32.totalorder %s91, %s93
    %p100 = scmp.eq.s32.totalorder %s15, 1
    %p101 = por %p99, %p100
    %p102 = scmp.ne.s32.totalorder %s93, %s94
    %p103 = scmp.eq.s32.totalorder %s15, 0
    %p104 = por %p102, %p103
    %p105 = scmp.ne.s32.totalorder %s93, %s94
    %p106 = scmp.eq.s32.totalorder %s16, 1
    %p107 = por %p105, %p106
    %p109 = scmp.ne.s32.totalorder %s94, %s108
    %p110 = scmp.eq.s32.totalorder %s16, 0
    %p111 = por %p109, %p110
    %s112 = ssub.s32 %s10, %s17
    %p113 = scmp.eq.s32.totalorder %s112, 0
    %s115 = sadd.s32 %s114, 1
    %s116 = scalar_select %p113, %s114, %s115
    %p119 = pneg %p113
    %p120 = scmp.eq.s32.totalorder %s10, 1
    %p121 = por %p119, %p120
    %p122 = scmp.ne.s32.totalorder %s114, %s117
    %p123 = scmp.eq.s32.totalorder %s10, 0
    %p124 = por %p122, %p123
    %p125 = scmp.ne.s32.totalorder %s114, %s117
    %p126 = scmp.eq.s32.totalorder %s15, 1
    %p127 = por %p125, %p126
    %p128 = scmp.ne.s32.totalorder %s117, %s118
    %p129 = scmp.eq.s32.totalorder %s15, 0
    %p130 = por %p128, %p129
    %p131 = scmp.ne.s32.totalorder %s117, %s118
    %p132 = scmp.eq.s32.totalorder %s16, 1
    %p133 = por %p131, %p132
    %p135 = scmp.ne.s32.totalorder %s118, %s134
    %p136 = scmp.eq.s32.totalorder %s16, 0
    %p137 = por %p135, %p136
    %p138 = scmp.le.s32.totalorder 1, %s10
    %p139 = scmp.lt.s32.totalorder %s10, 3
    %p140 = pnand %p138, %p139
    %p141 = pneg %p140
    // Predicated region
    $region9: #{tpu_custom_call.1} parent=5 // pred_check
      _
    $region10: #{tpu_custom_call.1} parent=5 // pred_check_branch
      %143 = sbr.rel (%p140) target = $region12
    $region11: #{tpu_custom_call.1} parent=5 // pred_region
      %s144 = ssub.s32 %s10, 1
      // Predicated region
      $region13: #{tpu_custom_call.1} parent=11 // pred_check
        %p145 = pneg %p57
      $region14: #{tpu_custom_call.1} parent=11 // pred_check_branch
        %147 = sbr.rel (%p145) target = $region16
      $region15: #{tpu_custom_call.1} parent=11 // pred_region
        _
      $region16: #{tpu_custom_call.1} parent=11 // pred_fallthru
        _
      // Predicated region
      $region17: #{tpu_custom_call.1} parent=11 // pred_check
        %p148 = pneg %p104
      $region18: #{tpu_custom_call.1} parent=11 // pred_check_branch
        %150 = sbr.rel (%p148) target = $region20
      $region19: #{tpu_custom_call.1} parent=11 // pred_region
        _
      $region20: #{tpu_custom_call.1} parent=11 // pred_fallthru
        _
    $region12: #{tpu_custom_call.1} parent=5 // pred_fallthru
      _
    %p151 = scmp.lt.s32.totalorder %s10, 2
    // Predicated region
    $region21: #{tpu_custom_call.1} parent=5 // pred_check
      %p152 = pneg %p151
    $region22: #{tpu_custom_call.1} parent=5 // pred_check_branch
      %154 = sbr.rel (%p152) target = $region24
    $region23: #{tpu_custom_call.1} parent=5 // pred_region
      // Predicated region
      $region25: #{tpu_custom_call.1} parent=23 // pred_check
        %p155 = pneg %p30
      $region26: #{tpu_custom_call.1} parent=23 // pred_check_branch
        %157 = sbr.rel (%p155) target = $region28
      $region27: #{tpu_custom_call.1} parent=23 // pred_region
        %p158 = scmp.lt.s32.totalorder %s10, 1
        %s159 = scalar_select %p158, %s10, 1
        %s160 = smul.addr %s159, 4
        %s161 = scalar_lea.vmem %s0, %s160
      $region28: #{tpu_custom_call.1} parent=23 // pred_fallthru
        _
      // Predicated region
      $region29: #{tpu_custom_call.1} parent=23 // pred_check
        %p162 = pneg %p77
      $region30: #{tpu_custom_call.1} parent=23 // pred_check_branch
        %164 = sbr.rel (%p162) target = $region32
      $region31: #{tpu_custom_call.1} parent=23 // pred_region
        %p165 = scmp.lt.s32.totalorder %s10, 1
        %s166 = scalar_select %p165, %s10, 1
        %s167 = smul.addr %s166, 8
        %s168 = scalar_lea.vmem %s2, %s167
      $region32: #{tpu_custom_call.1} parent=23 // pred_fallthru
        _
    $region24: #{tpu_custom_call.1} parent=5 // pred_fallthru
      _
    %p169 = scmp.le.s32.totalorder 1, %s10
    %p170 = scmp.lt.s32.totalorder %s10, 3
    %p171 = pnand %p169, %p170
    %p172 = pneg %p171
    // Predicated region
    $region33: #{tpu_custom_call.1} parent=5 // pred_check
      _
    $region34: #{tpu_custom_call.1} parent=5 // pred_check_branch
      %174 = sbr.rel (%p171) target = $region36
    $region35: #{tpu_custom_call.1} parent=5 // pred_region
      %s175 = ssub.s32 %s10, 1
      %p176 = scmp.lt.s32.totalorder %s15, 1
      %s177 = scalar_select %p176, %s15, 1
      %s178 = smul.addr %s177, 4
      %s179 = scalar_lea.vmem %s0, %s178
      %p180 = pneg %p36
      %p181 = pneg %p33
      %p182 = pneg %p57
      %p183 = pneg %p54
      %p184 = scmp.lt.s32.totalorder %s15, 1
      %s185 = scalar_select %p184, %s15, 1
      %s186 = smul.addr %s185, 8
      %s187 = scalar_lea.vmem %s2, %s186
      %p188 = pneg %p83
      %p189 = pneg %p80
      %p190 = pneg %p104
      %p191 = pneg %p101
      %p192 = pneg %p130
      %p193 = pneg %p127
      %p194 = scmp.lt.s32.totalorder %s15, 1
      %s195 = scalar_select %p194, %s15, 1
      %s196 = smul.addr %s195, 8
      %s197 = scalar_lea.vmem %s4, %s196
      %p198 = scmp.lt.s32.totalorder %s15, 1
      %s199 = scalar_select %p198, %s15, 1
      %s200 = smul.addr %s199, 4
      %s201 = scalar_lea.vmem %s0, %s200
      %p202 = scmp.lt.s32.totalorder %s15, 1
      %s203 = scalar_select %p202, %s15, 1
      %s204 = smul.addr %s203, 8
      %s205 = scalar_lea.vmem %s2, %s204
      %p206 = scmp.lt.s32.totalorder %s15, 1
      %s207 = scalar_select %p206, %s15, 1
      %s208 = smul.addr %s207, 8
      %s209 = scalar_lea.vmem %s4, %s208
      %v212 = vld [vmem:[%s201] sm:$0xf]
      %v213 = vmul.bf16 %v212, 1097154917
      %v214 = vld [vmem:[%s1] sm:$0xf]
      %v215 = vld [vmem:[%s1 + $0x4] sm:$0xf]
      %v218 = vunpack.c.l.b16 %v214
      %v219 = vunpack.c.l.b16 %v215
      %v220 = vpack.c.b16 %v219, %v218
      %222 = vmatprep.subr.bf16.mxu0 0
      %223 = vmatpush1.bf16.xpose.msra.mxu0 0
      %224 = vmatprep.subr.bf16.mxu0 0
      %225 = vmatpush1.bf16.xpose.msra.mxu0 0
      %226 = vmatprep.subr.bf16.mxu0 0
      %227 = vmatpush1.bf16.xpose.msra.mxu0 0
      %228 = vmatprep.subr.bf16.mxu0 0
      %229 = vmatpush1.bf16.xpose.msra.mxu0 0
      %230 = vmatprep.subr.bf16.mxu0 0
      %231 = vmatpush1.bf16.xpose.msra.mxu0 0
      %232 = vmatprep.subr.bf16.mxu0 0
      %233 = vmatpush1.bf16.xpose.msra.mxu0 0
      %234 = vmatprep.subr.bf16.mxu0 0
      %235 = vmatpush1.bf16.xpose.msra.mxu0 0
      %236 = vmatprep.subr.bf16.mxu0 0
      %237 = vmatpush1.bf16.xpose.msra.mxu0 %v220
      %238 = vmatprep.subr.bf16.mxu0 0
      %239 = vmatpush2.bf16.xpose.msra.mxu0 0
      %240 = vmatprep.subr.bf16.mxu0 0
      %241 = vmatpush2.bf16.xpose.msra.mxu0 0
      %242 = vmatprep.subr.bf16.mxu0 0
      %243 = vmatpush2.bf16.xpose.msra.mxu0 0
      %244 = vmatprep.subr.bf16.mxu0 0
      %245 = vmatpush2.bf16.xpose.msra.mxu0 0
      %246 = vmatprep.subr.bf16.mxu0 0
      %247 = vmatpush2.bf16.xpose.msra.mxu0 0
      %248 = vmatprep.subr.bf16.mxu0 0
      %249 = vmatpush2.bf16.xpose.msra.mxu0 0
      %250 = vmatprep.subr.bf16.mxu0 0
      %251 = vmatpush2.bf16.xpose.msra.mxu0 0
      %252 = vmatprep.subr.bf16.mxu0 0
      %253 = vmatpush2.bf16.xpose.msra.mxu0 0
      %254 = vmatprep.mubr.bf16.mxu0 0
      %255 = vmatmul.mubr.bf16.gmra.mxu0 %v213
      %v256 = vpop.f32.mrf.mxu0
      %v257 = vadd.f32 0.0, %v256
      %v258 = vpop.f32.mrf.mxu0
      %v259 = vpop.f32.mrf.mxu0
      %v260 = vpop.f32.mrf.mxu0
      %261 = vdwg.mxu0
      %vm262 = vcmask 130048
      %v263 = vsel %vm262, %v257, -inf
      %264 = vmax.xlane.f32.xlu0 %v263
      %v265 = vpop.xlane.xlu0 %264
      %s266 = smul.u32 %s15, 8
      %v267 = vlaneseq
      %v268 = vshrl.u32 %v267, 7
      %v269 = vstv %s266
      %v270 = vadd.s32 %v269, %v268
      %v271 = vlaneseq
      %v272 = vand.u32 %v271, 127
      %vm273 = vcmp.eq.s32.totalorder %v272, %v270
      %v274 = vsel %vm273, %v257, 0.0
      %v275 = vsel %vm262, %v274, 0.0
      %276 = vadd.xlane.f32.xlu0 %v275
      %v277 = vpop.xlane.xlu0 %276
      %v278 = vsub.f32 %v257, %v265
      %v279 = vmul.f32 %v278, 1.442695
      %v280 = vpow.pop %v279
      %v281 = vsel %vm262, %v280, 0.0
      %282 = vadd.xlane.f32.xlu0 %v281
      %v283 = vpop.xlane.xlu0 %282
      %v284 = vsub.f32 %v277, %v265
      %v285 = vmul.f32 %v284, 1.442695
      %v286 = vpow.pop %v285
      %v287 = vsub.f32 %v283, %v286
      %v288 = vadd.f32 %v287, 1e-12
      %v289 = vlog2.pop %v288
      %v290 = vmul.f32 %v289, 0.6931472
      %v291 = vld [vmem:[%s205] sm:$0xff]
      %v292 = vld [vmem:[%s3] sm:$0x1]
      %293 = vset.pattern.permute.xlu0 0
      %294 = vperm.xlu0 %293, %v291
      %v295 = vpop.permute.xlu0 %294
      %v296 = vlaneseq
      %v297 = vshrl.u32 %v296, 7
      %v298 = vsub.s32 0, %v297
      %v299 = vrot.slane %v292, %v298
      %vm300 = vcmp.eq.s32.totalorder %v295, %v299
      %v301 = vsel %vm300, %v257, 0.0
      %v302 = vsel %vm262, %v301, 0.0
      %303 = vadd.xlane.f32.xlu0 %v302
      %v304 = vpop.xlane.xlu0 %303
      %v305 = vsel %vm300, 1.0, 0.0
      %v306 = vsel %vm262, %v305, 0.0
      %307 = vadd.xlane.f32.xlu0 %v306
      %v308 = vpop.xlane.xlu0 %307
      %v309 = vsub.f32 %v308, 1.0
      %v310 = vsub.f32 %v304, %v277
      %v311 = vadd.f32 %v265, %v290
      %v312 = vmul.f32 %v309, %v311
      %v313 = vsub.f32 %v310, %v312
      %vm314 = vcmp.eq.f32.partialorder %v309, 0.0
      %v315 = vsel %vm314, 0.0, %v313
      %v316 = vrcp.pop %v309
      %v317 = vmul.f32 %v315, %v316
      %vm318 = vcmask 7168
      %319 = vst.msk [vmem:[%s209] sm:$0xff] %vm318, %v317
      %p320 = scmp.lt.s32.totalorder %s15, 1
      %s321 = scalar_select %p320, %s15, 1
      %s322 = smul.addr %s321, 8
      %s323 = scalar_lea.vmem %s4, %s322
      // Predicated region
      $region37: #{tpu_custom_call.1} parent=35 // pred_check
        %p324 = pneg %p127
      $region38: #{tpu_custom_call.1} parent=35 // pred_check_branch
        %326 = sbr.rel (%p324) target = $region40
      $region39: #{tpu_custom_call.1} parent=35 // pred_region
        _
      $region40: #{tpu_custom_call.1} parent=35 // pred_fallthru
        _
    $region36: #{tpu_custom_call.1} parent=5 // pred_fallthru
      _
    %p327 = scmp.le.s32.totalorder 2, %s10
    // Predicated region
    $region41: #{tpu_custom_call.1} parent=5 // pred_check
      %p328 = pneg %p327
    $region42: #{tpu_custom_call.1} parent=5 // pred_check_branch
      %330 = sbr.rel (%p328) target = $region44
    $region43: #{tpu_custom_call.1} parent=5 // pred_region
      %s331 = ssub.s32 %s10, 2
      // Predicated region
      $region45: #{tpu_custom_call.1} parent=43 // pred_check
        %p332 = pneg %p133
      $region46: #{tpu_custom_call.1} parent=43 // pred_check_branch
        %334 = sbr.rel (%p332) target = $region48
      $region47: #{tpu_custom_call.1} parent=43 // pred_region
        %p335 = scmp.lt.s32.totalorder %s16, 1
        %s336 = scalar_select %p335, %s16, 1
        %s337 = smul.addr %s336, 8
        %s338 = scalar_lea.vmem %s4, %s337
      $region48: #{tpu_custom_call.1} parent=43 // pred_fallthru
        _
    $region44: #{tpu_custom_call.1} parent=5 // pred_fallthru
      _
  $region6: #{tpu_custom_call.1} parent=0 // loop_footer
    %s14 = sadd.s32 1, %s10
  $region7: #{tpu_custom_call.1} parent=0 // loop_footer_branch
    %9 = sbr.rel target = $region3
  $region8: #{tpu_custom_call.1} parent=0 // loop_exit
    _

// kernel: tpu_custom_call.1
$region0: #{tpu_custom_call.1}
  #allocation0 [shape = 'u32[]', space=smem, size = 0x4, offset = 0x4, fixed_abs, tag = 'smem constant byte address 0x4 - core index']
  #allocation1 [shape = 'u32[144,128]{1,0:T(1,128)}', space=vmem, size = 0x12000, scoped, tag = 'internal scratch']
  %s0 = inlined_call_operand.vmem [shape: bf16[16,128], index: 0, kind: input, shape index: {}]
  %s1 = inlined_call_operand.vmem [shape: bf16[16,128], index: 1, kind: input, shape index: {}]
  %s2 = inlined_call_operand.vmem [shape: s32[16,1], index: 2, kind: input, shape index: {}]
  %s3 = inlined_call_operand.vmem [shape: s32[1,16], index: 3, kind: input, shape index: {}]
  %s4 = inlined_call_operand.vmem [shape: f32[16,1], index: 4, kind: output, shape index: {}]
  %s5 = sld [smem:[#allocation0]]
  $region49: #{tpu_custom_call.1} parent=0
    _
  %s7 = ssub.s32 1, %s5
  %s8 = scalar_select 0, %s7, %s5
  loop: start=0, step=1, limit=4
  $region2: #{tpu_custom_call.1} parent=0 // loop_pre_header
    _
  $region3: #{tpu_custom_call.1} parent=0 // loop_header
    %s10 = sphi 0, %s14
    %p11 = scmp.ge.s32.totalorder %s10, 4
    %s20 = sphi 0, %s22
    %s23 = sphi 0, %s20
    %s24 = sphi 0, %s23
    %s40 = sphi 0, %s24
    %s44 = sphi 0, %s44
    %s46 = sphi 0, %s44
    %s47 = sphi 0, %s46
    %s61 = sphi 0, %s47
    %s67 = sphi 0, %s69
    %s70 = sphi 0, %s67
    %s71 = sphi 0, %s70
    %s87 = sphi 0, %s71
    %s91 = sphi 0, %s91
    %s93 = sphi 0, %s91
    %s94 = sphi 0, %s93
    %s108 = sphi 0, %s94
    %s114 = sphi 0, %s116
    %s117 = sphi 0, %s114
    %s118 = sphi 0, %s117
    %s134 = sphi 0, %s118
  $region4: #{tpu_custom_call.1} parent=0 // loop_header_branch
    %13 = sbr.rel (%p11) target = $region8
  $region5: #{tpu_custom_call.1} parent=0 // loop_body
    %s15 = ssub.s32 %s10, 1
    %s16 = ssub.s32 %s10, 2
    %s17 = sadd.s32 %s10, 1
    %s18 = ssub.s32 %s10, %s17
    %p19 = scmp.eq.s32.totalorder %s18, 0
    %s21 = sadd.s32 %s20, 1
    %s22 = scalar_select %p19, %s20, %s21
    %p25 = pneg %p19
    %p26 = scmp.eq.s32.totalorder %s10, 1
    %p27 = por %p25, %p26
    %p28 = scmp.ne.s32.totalorder %s20, %s23
    %p29 = scmp.eq.s32.totalorder %s10, 0
    %p30 = por %p28, %p29
    %p31 = scmp.ne.s32.totalorder %s20, %s23
    %p32 = scmp.eq.s32.totalorder %s15, 1
    %p33 = por %p31, %p32
    %p34 = scmp.ne.s32.totalorder %s23, %s24
    %p35 = scmp.eq.s32.totalorder %s15, 0
    %p36 = por %p34, %p35
    %p37 = scmp.ne.s32.totalorder %s23, %s24
    %p38 = scmp.eq.s32.totalorder %s16, 1
    %p39 = por %p37, %p38
    %p41 = scmp.ne.s32.totalorder %s24, %s40
    %p42 = scmp.eq.s32.totalorder %s16, 0
    %p43 = por %p41, %p42
    %s45 = sadd.s32 %s44, 1
    %p48 = scmp.eq.s32.totalorder %s10, 1
    %p49 = scmp.ne.s32.totalorder %s44, %s46
    %p50 = scmp.eq.s32.totalorder %s10, 0
    %p51 = por %p49, %p50
    %p52 = scmp.ne.s32.totalorder %s44, %s46
    %p53 = scmp.eq.s32.totalorder %s15, 1
    %p54 = por %p52, %p53
    %p55 = scmp.ne.s32.totalorder %s46, %s47
    %p56 = scmp.eq.s32.totalorder %s15, 0
    %p57 = por %p55, %p56
    %p58 = scmp.ne.s32.totalorder %s46, %s47
    %p59 = scmp.eq.s32.totalorder %s16, 1
    %p60 = por %p58, %p59
    %p62 = scmp.ne.s32.totalorder %s47, %s61
    %p63 = scmp.eq.s32.totalorder %s16, 0
    %p64 = por %p62, %p63
    %s65 = ssub.s32 %s10, %s17
    %p66 = scmp.eq.s32.totalorder %s65, 0
    %s68 = sadd.s32 %s67, 1
    %s69 = scalar_select %p66, %s67, %s68
    %p72 = pneg %p66
    %p73 = scmp.eq.s32.totalorder %s10, 1
    %p74 = por %p72, %p73
    %p75 = scmp.ne.s32.totalorder %s67, %s70
    %p76 = scmp.eq.s32.totalorder %s10, 0
    %p77 = por %p75, %p76
    %p78 = scmp.ne.s32.totalorder %s67, %s70
    %p79 = scmp.eq.s32.totalorder %s15, 1
    %p80 = por %p78, %p79
    %p81 = scmp.ne.s32.totalorder %s70, %s71
    %p82 = scmp.eq.s32.totalorder %s15, 0
    %p83 = por %p81, %p82
    %p84 = scmp.ne.s32.totalorder %s70, %s71
    %p85 = scmp.eq.s32.totalorder %s16, 1
    %p86 = por %p84, %p85
    %p88 = scmp.ne.s32.totalorder %s71, %s87
    %p89 = scmp.eq.s32.totalorder %s16, 0
    %p90 = por %p88, %p89
    %s92 = sadd.s32 %s91, 1
    %p95 = scmp.eq.s32.totalorder %s10, 1
    %p96 = scmp.ne.s32.totalorder %s91, %s93
    %p97 = scmp.eq.s32.totalorder %s10, 0
    %p98 = por %p96, %p97
    %p99 = scmp.ne.s32.totalorder %s91, %s93
    %p100 = scmp.eq.s32.totalorder %s15, 1
    %p101 = por %p99, %p100
    %p102 = scmp.ne.s32.totalorder %s93, %s94
    %p103 = scmp.eq.s32.totalorder %s15, 0
    %p104 = por %p102, %p103
    %p105 = scmp.ne.s32.totalorder %s93, %s94
    %p106 = scmp.eq.s32.totalorder %s16, 1
    %p107 = por %p105, %p106
    %p109 = scmp.ne.s32.totalorder %s94, %s108
    %p110 = scmp.eq.s32.totalorder %s16, 0
    %p111 = por %p109, %p110
    %s112 = ssub.s32 %s10, %s17
    %p113 = scmp.eq.s32.totalorder %s112, 0
    %s115 = sadd.s32 %s114, 1
    %s116 = scalar_select %p113, %s114, %s115
    %p119 = pneg %p113
    %p120 = scmp.eq.s32.totalorder %s10, 1
    %p121 = por %p119, %p120
    %p122 = scmp.ne.s32.totalorder %s114, %s117
    %p123 = scmp.eq.s32.totalorder %s10, 0
    %p124 = por %p122, %p123
    %p125 = scmp.ne.s32.totalorder %s114, %s117
    %p126 = scmp.eq.s32.totalorder %s15, 1
    %p127 = por %p125, %p126
    %p128 = scmp.ne.s32.totalorder %s117, %s118
    %p129 = scmp.eq.s32.totalorder %s15, 0
    %p130 = por %p128, %p129
    %p131 = scmp.ne.s32.totalorder %s117, %s118
    %p132 = scmp.eq.s32.totalorder %s16, 1
    %p133 = por %p131, %p132
    %p135 = scmp.ne.s32.totalorder %s118, %s134
    %p136 = scmp.eq.s32.totalorder %s16, 0
    %p137 = por %p135, %p136
    %p138 = scmp.le.s32.totalorder 1, %s10
    %p139 = scmp.lt.s32.totalorder %s10, 3
    %p140 = pnand %p138, %p139
    %p141 = pneg %p140
    // Predicated region
    $region9: #{tpu_custom_call.1} parent=5 // pred_check
      _
    $region10: #{tpu_custom_call.1} parent=5 // pred_check_branch
      %143 = sbr.rel (%p140) target = $region12
    $region11: #{tpu_custom_call.1} parent=5 // pred_region
      %s144 = ssub.s32 %s10, 1
      // Predicated region
      $region13: #{tpu_custom_call.1} parent=11 // pred_check
        %p145 = pneg %p57
      $region14: #{tpu_custom_call.1} parent=11 // pred_check_branch
        %147 = sbr.rel (%p145) target = $region16
      $region15: #{tpu_custom_call.1} parent=11 // pred_region
        _
      $region16: #{tpu_custom_call.1} parent=11 // pred_fallthru
        _
      // Predicated region
      $region17: #{tpu_custom_call.1} parent=11 // pred_check
        %p148 = pneg %p104
      $region18: #{tpu_custom_call.1} parent=11 // pred_check_branch
        %150 = sbr.rel (%p148) target = $region20
      $region19: #{tpu_custom_call.1} parent=11 // pred_region
        _
      $region20: #{tpu_custom_call.1} parent=11 // pred_fallthru
        _
    $region12: #{tpu_custom_call.1} parent=5 // pred_fallthru
      _
    %p151 = scmp.lt.s32.totalorder %s10, 2
    // Predicated region
    $region21: #{tpu_custom_call.1} parent=5 // pred_check
      %p152 = pneg %p151
    $region22: #{tpu_custom_call.1} parent=5 // pred_check_branch
      %154 = sbr.rel (%p152) target = $region24
    $region23: #{tpu_custom_call.1} parent=5 // pred_region
      // Predicated region
      $region25: #{tpu_custom_call.1} parent=23 // pred_check
        %p155 = pneg %p30
      $region26: #{tpu_custom_call.1} parent=23 // pred_check_branch
        %157 = sbr.rel (%p155) target = $region28
      $region27: #{tpu_custom_call.1} parent=23 // pred_region
        %p158 = scmp.lt.s32.totalorder %s10, 1
        %s159 = scalar_select %p158, %s10, 1
        %s160 = smul.addr %s159, 4
        %s161 = scalar_lea.vmem %s0, %s160
      $region28: #{tpu_custom_call.1} parent=23 // pred_fallthru
        _
      // Predicated region
      $region29: #{tpu_custom_call.1} parent=23 // pred_check
        %p162 = pneg %p77
      $region30: #{tpu_custom_call.1} parent=23 // pred_check_branch
        %164 = sbr.rel (%p162) target = $region32
      $region31: #{tpu_custom_call.1} parent=23 // pred_region
        %p165 = scmp.lt.s32.totalorder %s10, 1
        %s166 = scalar_select %p165, %s10, 1
        %s167 = smul.addr %s166, 8
        %s168 = scalar_lea.vmem %s2, %s167
      $region32: #{tpu_custom_call.1} parent=23 // pred_fallthru
        _
    $region24: #{tpu_custom_call.1} parent=5 // pred_fallthru
      _
    %p169 = scmp.le.s32.totalorder 1, %s10
    %p170 = scmp.lt.s32.totalorder %s10, 3
    %p171 = pnand %p169, %p170
    %p172 = pneg %p171
    // Predicated region
    $region33: #{tpu_custom_call.1} parent=5 // pred_check
      _
    $region34: #{tpu_custom_call.1} parent=5 // pred_check_branch
      %174 = sbr.rel (%p171) target = $region36
    $region35: #{tpu_custom_call.1} parent=5 // pred_region
      %s175 = ssub.s32 %s10, 1
      %p176 = scmp.lt.s32.totalorder %s15, 1
      %s177 = scalar_select %p176, %s15, 1
      %s178 = smul.addr %s177, 4
      %s179 = scalar_lea.vmem %s0, %s178
      %p180 = pneg %p36
      %p181 = pneg %p33
      %p182 = pneg %p57
      %p183 = pneg %p54
      %p184 = scmp.lt.s32.totalorder %s15, 1
      %s185 = scalar_select %p184, %s15, 1
      %s186 = smul.addr %s185, 8
      %s187 = scalar_lea.vmem %s2, %s186
      %p188 = pneg %p83
      %p189 = pneg %p80
      %p190 = pneg %p104
      %p191 = pneg %p101
      %p192 = pneg %p130
      %p193 = pneg %p127
      %p194 = scmp.lt.s32.totalorder %s15, 1
      %s195 = scalar_select %p194, %s15, 1
      %s196 = smul.addr %s195, 8
      %s197 = scalar_lea.vmem %s4, %s196
      %p198 = scmp.lt.s32.totalorder %s15, 1
      %s199 = scalar_select %p198, %s15, 1
      %s200 = smul.addr %s199, 4
      %s201 = scalar_lea.vmem %s0, %s200
      %p202 = scmp.lt.s32.totalorder %s15, 1
      %s203 = scalar_select %p202, %s15, 1
      %s204 = smul.addr %s203, 8
      %s205 = scalar_lea.vmem %s2, %s204
      %p206 = scmp.lt.s32.totalorder %s15, 1
      %s207 = scalar_select %p206, %s15, 1
      %s208 = smul.addr %s207, 8
      %s209 = scalar_lea.vmem %s4, %s208
      %v212 = vld [vmem:[%s201] sm:$0xf]
      %v213 = vmul.bf16 %v212, 1097154917
      %v214 = vld [vmem:[%s1] sm:$0xf]
      %v215 = vld [vmem:[%s1 + $0x4] sm:$0xf]
      %v218 = vunpack.c.l.b16 %v214
      %v219 = vunpack.c.l.b16 %v215
      %v220 = vpack.c.b16 %v219, %v218
      %222 = vmatprep.subr.bf16.mxu0 0
      %223 = vmatpush1.bf16.xpose.msra.mxu0 0
      %224 = vmatprep.subr.bf16.mxu0 0
      %225 = vmatpush1.bf16.xpose.msra.mxu0 0
      %226 = vmatprep.subr.bf16.mxu0 0
      %227 = vmatpush1.bf16.xpose.msra.mxu0 0
      %228 = vmatprep.subr.bf16.mxu0 0
      %229 = vmatpush1.bf16.xpose.msra.mxu0 0
      %230 = vmatprep.subr.bf16.mxu0 0
      %231 = vmatpush1.bf16.xpose.msra.mxu0 0
      %232 = vmatprep.subr.bf16.mxu0 0
      %233 = vmatpush1.bf16.xpose.msra.mxu0 0
      %234 = vmatprep.subr.bf16.mxu0 0
      %235 = vmatpush1.bf16.xpose.msra.mxu0 0
      %236 = vmatprep.subr.bf16.mxu0 0
      %237 = vmatpush1.bf16.xpose.msra.mxu0 %v220
      %238 = vmatprep.subr.bf16.mxu0 0
      %239 = vmatpush2.bf16.xpose.msra.mxu0 0
      %240 = vmatprep.subr.bf16.mxu0 0
      %241 = vmatpush2.bf16.xpose.msra.mxu0 0
      %242 = vmatprep.subr.bf16.mxu0 0
      %243 = vmatpush2.bf16.xpose.msra.mxu0 0
      %244 = vmatprep.subr.bf16.mxu0 0
      %245 = vmatpush2.bf16.xpose.msra.mxu0 0
      %246 = vmatprep.subr.bf16.mxu0 0
      %247 = vmatpush2.bf16.xpose.msra.mxu0 0
      %248 = vmatprep.subr.bf16.mxu0 0
      %249 = vmatpush2.bf16.xpose.msra.mxu0 0
      %250 = vmatprep.subr.bf16.mxu0 0
      %251 = vmatpush2.bf16.xpose.msra.mxu0 0
      %252 = vmatprep.subr.bf16.mxu0 0
      %253 = vmatpush2.bf16.xpose.msra.mxu0 0
      %254 = vmatprep.mubr.bf16.mxu0 0
      %255 = vmatmul.mubr.bf16.gmra.mxu0 %v213
      %v256 = vpop.f32.mrf.mxu0
      %v257 = vadd.f32 0.0, %v256
      %v258 = vpop.f32.mrf.mxu0
      %v259 = vpop.f32.mrf.mxu0
      %v260 = vpop.f32.mrf.mxu0
      %261 = vdwg.mxu0
      %vm262 = vcmask 130048
      %v263 = vsel %vm262, %v257, -inf
      %264 = vmax.xlane.f32.xlu0 %v263
      %v265 = vpop.xlane.xlu0 %264
      %s266 = smul.u32 %s15, 8
      %v267 = vlaneseq
      %v268 = vshrl.u32 %v267, 7
      %v269 = vstv %s266
      %v270 = vadd.s32 %v269, %v268
      %v271 = vlaneseq
      %v272 = vand.u32 %v271, 127
      %vm273 = vcmp.eq.s32.totalorder %v272, %v270
      %v274 = vsel %vm273, %v257, 0.0
      %v275 = vsel %vm262, %v274, 0.0
      %276 = vadd.xlane.f32.xlu0 %v275
      %v277 = vpop.xlane.xlu0 %276
      %v278 = vsub.f32 %v257, %v265
      %v279 = vmul.f32 %v278, 1.442695
      %v280 = vpow.pop %v279
      %v281 = vsel %vm262, %v280, 0.0
      %282 = vadd.xlane.f32.xlu0 %v281
      %v283 = vpop.xlane.xlu0 %282
      %v284 = vsub.f32 %v277, %v265
      %v285 = vmul.f32 %v284, 1.442695
      %v286 = vpow.pop %v285
      %v287 = vsub.f32 %v283, %v286
      %v288 = vadd.f32 %v287, 1e-12
      %v289 = vlog2.pop %v288
      %v290 = vmul.f32 %v289, 0.6931472
      %v291 = vld [vmem:[%s205] sm:$0xff]
      %v292 = vld [vmem:[%s3] sm:$0x1]
      %293 = vset.pattern.permute.xlu0 0
      %294 = vperm.xlu0 %293, %v291
      %v295 = vpop.permute.xlu0 %294
      %v296 = vlaneseq
      %v297 = vshrl.u32 %v296, 7
      %v298 = vsub.s32 0, %v297
      %v299 = vrot.slane %v292, %v298
      %vm300 = vcmp.eq.s32.totalorder %v295, %v299
      %v301 = vsel %vm300, %v257, 0.0
      %v302 = vsel %vm262, %v301, 0.0
      %303 = vadd.xlane.f32.xlu0 %v302
      %v304 = vpop.xlane.xlu0 %303
      %v305 = vsel %vm300, 1.0, 0.0
      %v306 = vsel %vm262, %v305, 0.0
      %307 = vadd.xlane.f32.xlu0 %v306
      %v308 = vpop.xlane.xlu0 %307
      %v309 = vsub.f32 %v308, 1.0
      %v310 = vsub.f32 %v304, %v277
      %v311 = vadd.f32 %v265, %v290
      %v312 = vmul.f32 %v309, %v311
      %v313 = vsub.f32 %v310, %v312
      %vm314 = vcmp.eq.f32.partialorder %v309, 0.0
      %v315 = vsel %vm314, 0.0, %v313
      %v316 = vrcp.pop %v309
      %v317 = vmul.f32 %v315, %v316
      %vm318 = vcmask 7168
      %319 = vst.msk [vmem:[%s209] sm:$0xff] %vm318, %v317
      %p320 = scmp.lt.s32.totalorder %s15, 1
      %s321 = scalar_select %p320, %s15, 1
      %s322 = smul.addr %s321, 8
      %s323 = scalar_lea.vmem %s4, %s322
      // Predicated region
      $region37: #{tpu_custom_call.1} parent=35 // pred_check
        %p324 = pneg %p127
      $region38: #{tpu_custom_call.1} parent=35 // pred_check_branch
        %326 = sbr.rel (%p324) target = $region40
      $region39: #{tpu_custom_call.1} parent=35 // pred_region
        _
      $region40: #{tpu_custom_call.1} parent=35 // pred_fallthru
        _
    $region36: #{tpu_custom_call.1} parent=5 // pred_fallthru
      _
    %p327 = scmp.le.s32.totalorder 2, %s10
    // Predicated region
    $region41: #{tpu_custom_call.1} parent=5 // pred_check
      %p328 = pneg %p327
    $region42: #{tpu_custom_call.1} parent=5 // pred_check_branch
      %330 = sbr.rel (%p328) target = $region44
    $region43: #{tpu_custom_call.1} parent=5 // pred_region
      %s331 = ssub.s32 %s10, 2
      // Predicated region
      $region45: #{tpu_custom_call.1} parent=43 // pred_check
        %p332 = pneg %p133
      $region46: #{tpu_custom_call.1} parent=43 // pred_check_branch
        %334 = sbr.rel (%p332) target = $region48
      $region47: #{tpu_custom_call.1} parent=43 // pred_region
        %p335 = scmp.lt.s32.totalorder %s16, 1
        %s336 = scalar_select %p335, %s16, 1
        %s337 = smul.addr %s336, 8
        %s338 = scalar_lea.vmem %s4, %s337
      $region48: #{tpu_custom_call.1} parent=43 // pred_fallthru
        _
    $region44: #{tpu_custom_call.1} parent=5 // pred_fallthru
      _
  $region6: #{tpu_custom_call.1} parent=0 // loop_footer
    %s14 = sadd.s32 1, %s10
  $region7: #{tpu_custom_call.1} parent=0 // loop_footer_branch
    %9 = sbr.rel target = $region3
  $region8: #{tpu_custom_call.1} parent=0 // loop_exit
    _

</llo_original>
